<compile_context>
chip_gen: v7x
topology: tpu7x:2x2x1
jax: 0.10.0
libtpu: 0.0.40
codegen_flags: <defaults>
</compile_context>

<pallas_src>
import jax
import jax.numpy as jnp
from jax.experimental import pallas as pl
from jax.experimental.pallas import tpu as pltpu

_H1 = 128          # l1 output width
_H2 = 256          # l2 output width
_OUT = 3           # true output width
_OUT_PAD = 128     # lane-dense padded output width


def _predictor_kernel(mp_ref,
                      x_ref, w1_ref, b1_ref, w2_ref, b2_ref, w3_ref, b3_ref,
                      o_ref):
    """One batch tile: 3 matmuls (bf16 in / f32 acc) + relu + relu + tanh."""
    max_pos = mp_ref[0]                                   # f32 scalar from SMEM

    x = x_ref[...]                                        # (TB, D) bf16

    h1 = jnp.dot(x, w1_ref[...],
                 preferred_element_type=jnp.float32)      # (TB, 128) f32
    h1 = jnp.maximum(h1 + b1_ref[...], 0.0)

    h2 = jnp.dot(h1.astype(jnp.bfloat16), w2_ref[...],
                 preferred_element_type=jnp.float32)      # (TB, 256) f32
    h2 = jnp.maximum(h2 + b2_ref[...], 0.0)

    h3 = jnp.dot(h2.astype(jnp.bfloat16), w3_ref[...],
                 preferred_element_type=jnp.float32)      # (TB, 128) f32
    h3 = h3 + b3_ref[...]

    o_ref[...] = (max_pos * jnp.tanh(h3)).astype(o_ref.dtype)


def predictor_forward(state, params, max_pos, *, block_b=256):
    """state: (B, state_dim) f32. Returns (B, 3) f32."""
    w1, b1, w2, b2, w3, b3 = params
    B, D = state.shape

    # --- prepare operands (one-time, outside the hot loop) ------------------
    # Lane-dense last layer: pad 3 -> 128 output columns with zeros.
    w3p = jnp.pad(w3, ((0, 0), (0, _OUT_PAD - _OUT)))
    b3p = jnp.pad(b3, ((0, 0), (0, _OUT_PAD - _OUT)))

    # bf16 matmul inputs, f32 accumulation inside the kernel.
    x_bf = state.astype(jnp.bfloat16)
    w1_bf = w1.astype(jnp.bfloat16)
    w2_bf = w2.astype(jnp.bfloat16)
    w3_bf = w3p.astype(jnp.bfloat16)

    # --- batch tiling --------------------------------------------------------
    # TB: multiple of 8 (sublane), capped at block_b (256 fills the v6e/v7x
    # MXU M dim; use block_b=128 on v5e).  Small batches collapse to one tile.
    tb = min(block_b, ((B + 7) // 8) * 8)
    b_pad = ((B + tb - 1) // tb) * tb
    if b_pad != B:
        x_bf = jnp.pad(x_bf, ((0, b_pad - B), (0, 0)))
    nb = b_pad // tb

    max_pos_arr = jnp.asarray([max_pos], jnp.float32)     # runtime SMEM scalar

    # --- cost hint for the XLA scheduler -------------------------------------
    flops = 2 * b_pad * (D * _H1 + _H1 * _H2 + _H2 * _OUT_PAD)
    bytes_accessed = (
        x_bf.size * 2 + w1_bf.size * 2 + w2_bf.size * 2 + w3_bf.size * 2
        + b1.size * 4 + b2.size * 4 + b3p.size * 4 + b_pad * _OUT_PAD * 4)
    cost = pl.CostEstimate(flops=flops,
                           transcendentals=b_pad * _OUT_PAD,
                           bytes_accessed=bytes_accessed)

    def resident(shape):
        # Same block index for every grid step -> fetched once, stays in VMEM.
        return pl.BlockSpec(shape, lambda i: (0, 0))

    out_padded = pl.pallas_call(
        _predictor_kernel,
        out_shape=jax.ShapeDtypeStruct((b_pad, _OUT_PAD), jnp.float32),
        grid_spec=pltpu.PrefetchScalarGridSpec(
            num_scalar_prefetch=0,
            grid=(nb,),
            in_specs=[
                pl.BlockSpec(memory_space=pltpu.MemorySpace.SMEM),  # max_pos
                pl.BlockSpec((tb, D), lambda i: (i, 0)),            # x tile
                resident(w1_bf.shape),                              # (D, 128)
                resident(b1.shape),                                 # (1, 128)
                resident(w2_bf.shape),                              # (128, 256)
                resident(b2.shape),                                 # (1, 256)
                resident(w3_bf.shape),                              # (256, 128)
                resident(b3p.shape),                                # (1, 128)
            ],
            out_specs=pl.BlockSpec((tb, _OUT_PAD), lambda i: (i, 0)),
        ),
        compiler_params=pltpu.CompilerParams(
            dimension_semantics=("parallel",)),
        cost_estimate=cost,
    )(max_pos_arr, x_bf, w1_bf, b1, w2_bf, b2, w3_bf, b3p)

    return out_padded[:B, :_OUT]


def init_params(key, state_dim):
    """Deterministic synthetic parameters (PyTorch-like uniform fan-in init)."""
    def linear(key, fan_in, fan_out):
        kw, kb = jax.random.split(key)
        bound = 1.0 / jnp.sqrt(fan_in)
        w = jax.random.uniform(kw, (fan_in, fan_out), jnp.float32, -bound, bound)
        b = jax.random.uniform(kb, (1, fan_out), jnp.float32, -bound, bound)
        return w, b

    k1, k2, k3 = jax.random.split(key, 3)
    w1, b1 = linear(k1, state_dim, _H1)
    w2, b2 = linear(k2, _H1, _H2)
    w3, b3 = linear(k3, _H2, _OUT)
    return (w1, b1, w2, b2, w3, b3)


def predictor_ref(state, params, max_pos, *, bf16_matmuls=False):
    """Pure-JAX reference. bf16_matmuls=True mirrors the kernel's precision."""
    w1, b1, w2, b2, w3, b3 = params
    cast = (lambda a: a.astype(jnp.bfloat16)) if bf16_matmuls else (lambda a: a)
    h = jnp.maximum(
        jnp.dot(cast(state), cast(w1), preferred_element_type=jnp.float32) + b1,
        0.0)
    h = jnp.maximum(
        jnp.dot(cast(h), cast(w2), preferred_element_type=jnp.float32) + b2,
        0.0)
    h = jnp.dot(cast(h), cast(w3), preferred_element_type=jnp.float32) + b3
    return max_pos * jnp.tanh(h)


if __name__ == "__main__":
    key = jax.random.PRNGKey(0)
    k_params, k_state = jax.random.split(key)

    batch = 8
    state_dim = 32
    max_pos = 2.0

    params = init_params(k_params, state_dim)
    state = jax.random.normal(k_state, (batch, state_dim), jnp.float32)

    out = predictor_forward(state, params, max_pos)
    out = jax.block_until_ready(out)
    assert out.shape == (batch, 3)

    # Tight check vs a precision-matched (bf16-matmul) reference.
    ref_bf = predictor_ref(state, params, max_pos, bf16_matmuls=True)
    assert jnp.allclose(out, ref_bf, atol=5e-3, rtol=5e-3), \
        "mismatch vs precision-matched reference"

    # Loose check vs the full-f32 reference (bf16 matmul rounding only).
    ref_f32 = predictor_ref(state, params, max_pos, bf16_matmuls=False)
    assert jnp.allclose(out, ref_f32, atol=5e-2, rtol=5e-2), \
        "mismatch vs f32 reference"

    print("KERNEL_OK")
</pallas_src>

<mosaic_0001>
module attributes {stable_mosaic.version = 11 : i64} {
  func.func @_predictor_kernel(%arg0: i32, %arg1: memref<1xf32, #tpu.memory_space<smem>>, %arg2: memref<8x32xbf16, #tpu.memory_space<vmem>>, %arg3: memref<32x128xbf16, #tpu.memory_space<vmem>>, %arg4: memref<1x128xf32, #tpu.memory_space<vmem>>, %arg5: memref<128x256xbf16, #tpu.memory_space<vmem>>, %arg6: memref<1x256xf32, #tpu.memory_space<vmem>>, %arg7: memref<256x128xbf16, #tpu.memory_space<vmem>>, %arg8: memref<1x128xf32, #tpu.memory_space<vmem>>, %arg9: memref<8x128xf32, #tpu.memory_space<vmem>>) attributes {dimension_semantics = [#tpu.dimension_semantics<parallel>], iteration_bounds = array<i64: 1>, scalar_prefetch = 0 : i64, scratch_operands = 0 : i64, tpu.core_type = #tpu.core_type<tc>, window_params = [{transform_indices = @transform_0, window_bounds = array<i64: 1>}, {transform_indices = @transform_1, window_bounds = array<i64: 8, 32>}, {pipeline_mode = #tpu.pipeline_mode<synchronous>, transform_indices = @transform_2, window_bounds = array<i64: 32, 128>}, {pipeline_mode = #tpu.pipeline_mode<synchronous>, transform_indices = @transform_3, window_bounds = array<i64: 1, 128>}, {pipeline_mode = #tpu.pipeline_mode<synchronous>, transform_indices = @transform_4, window_bounds = array<i64: 128, 256>}, {pipeline_mode = #tpu.pipeline_mode<synchronous>, transform_indices = @transform_5, window_bounds = array<i64: 1, 256>}, {pipeline_mode = #tpu.pipeline_mode<synchronous>, transform_indices = @transform_6, window_bounds = array<i64: 256, 128>}, {pipeline_mode = #tpu.pipeline_mode<synchronous>, transform_indices = @transform_7, window_bounds = array<i64: 1, 128>}, {transform_indices = @transform_8, window_bounds = array<i64: 8, 128>}]} {
    %c0 = arith.constant 0 : index
    %0 = memref.load %arg1[%c0] : memref<1xf32, #tpu.memory_space<smem>>
    %c0_0 = arith.constant 0 : index
    %c0_1 = arith.constant 0 : index
    %1 = vector.load %arg2[%c0_0, %c0_1] : memref<8x32xbf16, #tpu.memory_space<vmem>>, vector<8x32xbf16>
    %c0_2 = arith.constant 0 : index
    %c0_3 = arith.constant 0 : index
    %2 = vector.load %arg3[%c0_2, %c0_3] : memref<32x128xbf16, #tpu.memory_space<vmem>>, vector<32x128xbf16>
    %cst = arith.constant dense<0.000000e+00> : vector<8x128xf32>
    %3 = tpu.matmul %1, %2, %cst {dimension_numbers = #tpu.dot_dimension_numbers<[1], [0], [0], [1], [0, 0, 1, 1], [], []>} : vector<8x32xbf16>, vector<32x128xbf16>, vector<8x128xf32> -> vector<8x128xf32>
    %c0_4 = arith.constant 0 : index
    %c0_5 = arith.constant 0 : index
    %4 = vector.load %arg4[%c0_4, %c0_5] : memref<1x128xf32, #tpu.memory_space<vmem>>, vector<1x128xf32>
    %5 = vector.broadcast %4 : vector<1x128xf32> to vector<8x128xf32>
    %6 = arith.addf %3, %5 : vector<8x128xf32>
    %cst_6 = arith.constant 0.000000e+00 : f32
    %7 = vector.broadcast %cst_6 : f32 to vector<8x128xf32>
    %8 = arith.maximumf %6, %7 : vector<8x128xf32>
    %9 = arith.truncf %8 : vector<8x128xf32> to vector<8x128xbf16>
    %c0_7 = arith.constant 0 : index
    %c0_8 = arith.constant 0 : index
    %10 = vector.load %arg5[%c0_7, %c0_8] : memref<128x256xbf16, #tpu.memory_space<vmem>>, vector<128x256xbf16>
    %cst_9 = arith.constant dense<0.000000e+00> : vector<8x256xf32>
    %11 = tpu.matmul %9, %10, %cst_9 {dimension_numbers = #tpu.dot_dimension_numbers<[1], [0], [0], [1], [0, 0, 1, 1], [], []>} : vector<8x128xbf16>, vector<128x256xbf16>, vector<8x256xf32> -> vector<8x256xf32>
    %c0_10 = arith.constant 0 : index
    %c0_11 = arith.constant 0 : index
    %12 = vector.load %arg6[%c0_10, %c0_11] : memref<1x256xf32, #tpu.memory_space<vmem>>, vector<1x256xf32>
    %13 = vector.broadcast %12 : vector<1x256xf32> to vector<8x256xf32>
    %14 = arith.addf %11, %13 : vector<8x256xf32>
    %cst_12 = arith.constant 0.000000e+00 : f32
    %15 = vector.broadcast %cst_12 : f32 to vector<8x256xf32>
    %16 = arith.maximumf %14, %15 : vector<8x256xf32>
    %17 = arith.truncf %16 : vector<8x256xf32> to vector<8x256xbf16>
    %c0_13 = arith.constant 0 : index
    %c0_14 = arith.constant 0 : index
    %18 = vector.load %arg7[%c0_13, %c0_14] : memref<256x128xbf16, #tpu.memory_space<vmem>>, vector<256x128xbf16>
    %cst_15 = arith.constant dense<0.000000e+00> : vector<8x128xf32>
    %19 = tpu.matmul %17, %18, %cst_15 {dimension_numbers = #tpu.dot_dimension_numbers<[1], [0], [0], [1], [0, 0, 1, 1], [], []>} : vector<8x256xbf16>, vector<256x128xbf16>, vector<8x128xf32> -> vector<8x128xf32>
    %c0_16 = arith.constant 0 : index
    %c0_17 = arith.constant 0 : index
    %20 = vector.load %arg8[%c0_16, %c0_17] : memref<1x128xf32, #tpu.memory_space<vmem>>, vector<1x128xf32>
    %21 = vector.broadcast %20 : vector<1x128xf32> to vector<8x128xf32>
    %22 = arith.addf %19, %21 : vector<8x128xf32>
    %23 = math.tanh %22 : vector<8x128xf32>
    %24 = vector.broadcast %0 : f32 to vector<8x128xf32>
    %25 = arith.mulf %24, %23 : vector<8x128xf32>
    %c0_18 = arith.constant 0 : index
    %c0_19 = arith.constant 0 : index
    %26 = vector.load %arg9[%c0_18, %c0_19] : memref<8x128xf32, #tpu.memory_space<vmem>>, vector<8x128xf32>
    tpu.vector_store %arg9[%c0_18, %c0_19], %25 {strides = array<i32>} : memref<8x128xf32, #tpu.memory_space<vmem>>, vector<8x128xf32>,
    return
  }
  func.func @transform_0(%arg0: i32) -> i32 {
    %c0_i32 = arith.constant 0 : i32
    %c0_i32_0 = arith.constant 0 : i32
    return %c0_i32 : i32
  }
  func.func @transform_1(%arg0: i32) -> (i32, i32) {
    %c0_i32 = arith.constant 0 : i32
    %c0_i32_0 = arith.constant 0 : i32
    return %arg0, %c0_i32 : i32, i32
  }
  func.func @transform_2(%arg0: i32) -> (i32, i32) {
    %c0_i32 = arith.constant 0 : i32
    %c0_i32_0 = arith.constant 0 : i32
    %c0_i32_1 = arith.constant 0 : i32
    return %c0_i32, %c0_i32_0 : i32, i32
  }
  func.func @transform_3(%arg0: i32) -> (i32, i32) {
    %c0_i32 = arith.constant 0 : i32
    %c0_i32_0 = arith.constant 0 : i32
    %c0_i32_1 = arith.constant 0 : i32
    return %c0_i32, %c0_i32_0 : i32, i32
  }
  func.func @transform_4(%arg0: i32) -> (i32, i32) {
    %c0_i32 = arith.constant 0 : i32
    %c0_i32_0 = arith.constant 0 : i32
    %c0_i32_1 = arith.constant 0 : i32
    return %c0_i32, %c0_i32_0 : i32, i32
  }
  func.func @transform_5(%arg0: i32) -> (i32, i32) {
    %c0_i32 = arith.constant 0 : i32
    %c0_i32_0 = arith.constant 0 : i32
    %c0_i32_1 = arith.constant 0 : i32
    return %c0_i32, %c0_i32_0 : i32, i32
  }
  func.func @transform_6(%arg0: i32) -> (i32, i32) {
    %c0_i32 = arith.constant 0 : i32
    %c0_i32_0 = arith.constant 0 : i32
    %c0_i32_1 = arith.constant 0 : i32
    return %c0_i32, %c0_i32_0 : i32, i32
  }
  func.func @transform_7(%arg0: i32) -> (i32, i32) {
    %c0_i32 = arith.constant 0 : i32
    %c0_i32_0 = arith.constant 0 : i32
    %c0_i32_1 = arith.constant 0 : i32
    return %c0_i32, %c0_i32_0 : i32, i32
  }
  func.func @transform_8(%arg0: i32) -> (i32, i32) {
    %c0_i32 = arith.constant 0 : i32
    %c0_i32_0 = arith.constant 0 : i32
    return %arg0, %c0_i32 : i32, i32
  }
}

</mosaic_0001>

<llo_original>
// kernel: tpu_custom_call.1
$region0: #{tpu_custom_call.1}
  #allocation0 [shape = 'u32[]', space=smem, size = 0x4, offset = 0x4, fixed_abs, tag = 'smem constant byte address 0x4 - core index']
  #allocation1 [shape = 'u32[144,128]{1,0:T(1,128)}', space=vmem, size = 0x12000, scoped, tag = 'internal scratch']
  #allocation2 [shape = 'f32[1]{0:T(128)S(6)}', space=smem, size = 0x200, scoped, tag = 'scoped memory for tpu_custom_call.1']
  %s0 = inlined_call_operand.<no memory space> [shape: f32[1], index: 0, kind: input, shape index: {}]
  %s1 = inlined_call_operand.hbm [shape: bf16[8,32], index: 1, kind: input, shape index: {}]
  %s2 = inlined_call_operand.hbm [shape: bf16[32,128], index: 2, kind: input, shape index: {}]
  %s3 = inlined_call_operand.vmem [shape: f32[1,128], index: 3, kind: input, shape index: {}]
  %s4 = inlined_call_operand.hbm [shape: bf16[128,256], index: 4, kind: input, shape index: {}]
  %s5 = inlined_call_operand.vmem [shape: f32[1,256], index: 5, kind: input, shape index: {}]
  %s6 = inlined_call_operand.hbm [shape: bf16[256,128], index: 6, kind: input, shape index: {}]
  %s7 = inlined_call_operand.vmem [shape: f32[1,128], index: 7, kind: input, shape index: {}]
  %s8 = inlined_call_operand.hbm [shape: f32[8,128], index: 8, kind: output, shape index: {}]
  %s9 = sld [smem:[#allocation0]]
  $region58: #{tpu_custom_call.1} parent=0
    _
  %s11 = ssub.s32 1, %s9
  %s12 = scalar_select 0, %s11, %s9
  %13 = sst [smem:[#allocation2]] %s0
  $region1: #{tpu_custom_call.1} parent=0
    #allocation3 [shape = 'u8[2048]{0}', space=vmem, size = 0x800, scoped, tag = 'input window, operand 1, single buffered']
    #allocation4 [shape = 's32[1]{0}', space=sflag, size = 0x4, scoped, tag = 'scoped memory for tpu_custom_call.1']
    #allocation5 [shape = 's32[1]{0}', space=sflag, size = 0x4, scoped, tag = 'scoped memory for tpu_custom_call.1']
    #allocation6 [shape = 'u8[8192]{0}', space=vmem, size = 0x2000, scoped, tag = 'input window, operand 2, single buffered']
    #allocation7 [shape = 's32[1]{0}', space=sflag, size = 0x4, scoped, tag = 'scoped memory for tpu_custom_call.1']
    #allocation8 [shape = 'u8[65536]{0}', space=vmem, size = 0x10000, scoped, tag = 'input window, operand 4, single buffered']
    #allocation9 [shape = 'u8[65536]{0}', space=vmem, size = 0x10000, scoped, tag = 'input window, operand 6, single buffered']
    #allocation10 [shape = 's32[1]{0}', space=sflag, size = 0x4, scoped, tag = 'scoped memory for tpu_custom_call.1']
    #allocation11 [shape = 'u8[4096]{0}', space=vmem, size = 0x1000, scoped, tag = 'output window, operand 0, single buffered']
    %14 = vsyncpa [#allocation4], 0
    %15 = vsyncpa [#allocation7], 0
    %16 = vsyncpa [#allocation10], 0
    %17 = vsyncpa [#allocation5], 0
    // Predicated region
    $region2: #{tpu_custom_call.1} parent=1 // pred_check
      _
    $region3: #{tpu_custom_call.1} parent=1 // pred_check_branch
      %19 = sbr.rel (0) target = $region5
    $region4: #{tpu_custom_call.1} parent=1 // pred_region
      _
    $region5: #{tpu_custom_call.1} parent=1 // pred_fallthru
      _
    // Predicated region
    $region6: #{tpu_custom_call.1} parent=1 // pred_check
      _
    $region7: #{tpu_custom_call.1} parent=1 // pred_check_branch
      %21 = sbr.rel (0) target = $region9
    $region8: #{tpu_custom_call.1} parent=1 // pred_region
      %s23 = ssub.s32 64, 64
      %24 = vsyncadd [#allocation4], %s23
      %s26 = sshll.u32 [#allocation3], 4
      %s27 = int_to_ptr.vmem [resolvable:$true] %s26
      %29 = dma.hbm_to_vmem [thread:$0]  %s1, 64, %s27, [#allocation4]
    $region9: #{tpu_custom_call.1} parent=1 // pred_fallthru
      _
    // Predicated region
    $region10: #{tpu_custom_call.1} parent=1 // pred_check
      _
    $region11: #{tpu_custom_call.1} parent=1 // pred_check_branch
      %31 = sbr.rel (0) target = $region13
    $region12: #{tpu_custom_call.1} parent=1 // pred_region
      %s33 = ssub.s32 256, 256
      %34 = vsyncadd [#allocation7], %s33
      %s35 = sshll.u32 [#allocation6], 4
      %s36 = int_to_ptr.vmem [resolvable:$true] %s35
      %41 = dma.hbm_to_vmem [thread:$0]  %s2, 256, %s36, [#allocation7], 64, 64, 4
    $region13: #{tpu_custom_call.1} parent=1 // pred_fallthru
      _
    // Predicated region
    $region14: #{tpu_custom_call.1} parent=1 // pred_check
      _
    $region15: #{tpu_custom_call.1} parent=1 // pred_check_branch
      %43 = sbr.rel (0) target = $region17
    $region16: #{tpu_custom_call.1} parent=1 // pred_region
      _
    $region17: #{tpu_custom_call.1} parent=1 // pred_fallthru
      _
    // Predicated region
    $region18: #{tpu_custom_call.1} parent=1 // pred_check
      _
    $region19: #{tpu_custom_call.1} parent=1 // pred_check_branch
      %45 = sbr.rel (0) target = $region21
    $region20: #{tpu_custom_call.1} parent=1 // pred_region
      %s47 = ssub.s32 2048, 2048
      %48 = vsyncadd [#allocation7], %s47
      %s49 = sshll.u32 [#allocation8], 4
      %s50 = int_to_ptr.vmem [resolvable:$true] %s49
      %55 = dma.hbm_to_vmem [thread:$0]  %s4, 2048, %s50, [#allocation7], 128, 128, 8
    $region21: #{tpu_custom_call.1} parent=1 // pred_fallthru
      _
    // Predicated region
    $region22: #{tpu_custom_call.1} parent=1 // pred_check
      _
    $region23: #{tpu_custom_call.1} parent=1 // pred_check_branch
      %57 = sbr.rel (0) target = $region25
    $region24: #{tpu_custom_call.1} parent=1 // pred_region
      _
    $region25: #{tpu_custom_call.1} parent=1 // pred_fallthru
      _
    // Predicated region
    $region26: #{tpu_custom_call.1} parent=1 // pred_check
      _
    $region27: #{tpu_custom_call.1} parent=1 // pred_check_branch
      %59 = sbr.rel (0) target = $region29
    $region28: #{tpu_custom_call.1} parent=1 // pred_region
      %s61 = ssub.s32 2048, 2048
      %62 = vsyncadd [#allocation10], %s61
      %s63 = sshll.u32 [#allocation9], 4
      %s64 = int_to_ptr.vmem [resolvable:$true] %s63
      %69 = dma.hbm_to_vmem [thread:$0]  %s6, 2048, %s64, [#allocation10], 64, 64, 4
    $region29: #{tpu_custom_call.1} parent=1 // pred_fallthru
      _
    // Predicated region
    $region30: #{tpu_custom_call.1} parent=1 // pred_check
      _
    $region31: #{tpu_custom_call.1} parent=1 // pred_check_branch
      %71 = sbr.rel (0) target = $region33
    $region32: #{tpu_custom_call.1} parent=1 // pred_region
      _
    $region33: #{tpu_custom_call.1} parent=1 // pred_fallthru
      _
    // Predicated region
    $region34: #{tpu_custom_call.1} parent=1 // pred_check
      _
    $region35: #{tpu_custom_call.1} parent=1 // pred_check_branch
      %73 = sbr.rel (0) target = $region37
    $region36: #{tpu_custom_call.1} parent=1 // pred_region
      %74 = dma.done [#allocation4], 64
    $region37: #{tpu_custom_call.1} parent=1 // pred_fallthru
      _
    // Predicated region
    $region38: #{tpu_custom_call.1} parent=1 // pred_check
      _
    $region39: #{tpu_custom_call.1} parent=1 // pred_check_branch
      %76 = sbr.rel (0) target = $region41
    $region40: #{tpu_custom_call.1} parent=1 // pred_region
      %77 = dma.done [#allocation7], 256
    $region41: #{tpu_custom_call.1} parent=1 // pred_fallthru
      _
    // Predicated region
    $region42: #{tpu_custom_call.1} parent=1 // pred_check
      _
    $region43: #{tpu_custom_call.1} parent=1 // pred_check_branch
      %79 = sbr.rel (0) target = $region45
    $region44: #{tpu_custom_call.1} parent=1 // pred_region
      %80 = dma.done [#allocation7], 2048
    $region45: #{tpu_custom_call.1} parent=1 // pred_fallthru
      _
    // Predicated region
    $region46: #{tpu_custom_call.1} parent=1 // pred_check
      _
    $region47: #{tpu_custom_call.1} parent=1 // pred_check_branch
      %82 = sbr.rel (0) target = $region49
    $region48: #{tpu_custom_call.1} parent=1 // pred_region
      %83 = dma.done [#allocation10], 2048
    $region49: #{tpu_custom_call.1} parent=1 // pred_fallthru
      _
    %s85 = sld [smem:[#allocation2]]
    %v86 = vld [vmem:[#allocation3] sm:$0xf]
    %v87 = vld [vmem:[#allocation6] sm:$0xf]
    %v88 = vld [vmem:[#allocation6 + $0x4] sm:$0xf]
    %v89 = vld [vmem:[#allocation6 + $0x8] sm:$0xf]
    %v90 = vld [vmem:[#allocation6 + $0xc] sm:$0xf]
    %v91 = vld [vmem:[%s3] sm:$0x1]
    %v93 = vlaneseq
    %v94 = vshrl.u32 %v93, 7
    %v95 = vsub.s32 0, %v94
    %v96 = vrot.slane %v91, %v95
    %v102 = vunpack.c.l.b16 %v87
    %v103 = vunpack.c.l.b16 %v88
    %v104 = vunpack.c.l.b16 %v89
    %v105 = vunpack.c.l.b16 %v90
    %v106 = vpack.c.b16 %v103, %v102
    %v107 = vpack.c.b16 %v105, %v104
    %vm110 = vcmask 261120
    %v112 = vsel %vm110, %v86, 0
    %114 = vmatprep.subr.bf16.mxu0 0
    %115 = vmatpush1.bf16.msra.mxu0 %v106
    %116 = vmatprep.subr.bf16.mxu0 0
    %117 = vmatpush1.bf16.msra.mxu0 %v107
    %118 = vmatprep.subr.bf16.mxu0 0
    %119 = vmatpush1.bf16.msra.mxu0 0
    %120 = vmatprep.subr.bf16.mxu0 0
    %121 = vmatpush1.bf16.msra.mxu0 0
    %122 = vmatprep.subr.bf16.mxu0 0
    %123 = vmatpush1.bf16.msra.mxu0 0
    %124 = vmatprep.subr.bf16.mxu0 0
    %125 = vmatpush1.bf16.msra.mxu0 0
    %126 = vmatprep.subr.bf16.mxu0 0
    %127 = vmatpush1.bf16.msra.mxu0 0
    %128 = vmatprep.subr.bf16.mxu0 0
    %129 = vmatpush1.bf16.msra.mxu0 0
    %130 = vmatprep.subr.bf16.mxu0 0
    %131 = vmatpush1.bf16.msra.mxu0 0
    %132 = vmatprep.subr.bf16.mxu0 0
    %133 = vmatpush1.bf16.msra.mxu0 0
    %134 = vmatprep.subr.bf16.mxu0 0
    %135 = vmatpush1.bf16.msra.mxu0 0
    %136 = vmatprep.subr.bf16.mxu0 0
    %137 = vmatpush1.bf16.msra.mxu0 0
    %138 = vmatprep.subr.bf16.mxu0 0
    %139 = vmatpush1.bf16.msra.mxu0 0
    %140 = vmatprep.subr.bf16.mxu0 0
    %141 = vmatpush1.bf16.msra.mxu0 0
    %142 = vmatprep.subr.bf16.mxu0 0
    %143 = vmatpush1.bf16.msra.mxu0 0
    %144 = vmatprep.subr.bf16.mxu0 0
    %145 = vmatpush1.bf16.msra.mxu0 0
    %146 = vmatprep.mubr.bf16.mxu0 0
    %147 = vmatmul.mubr.bf16.gmra.mrb[0].mxu0 %v112
    %v148 = vpop.f32.mrb[0].mxu0
    %v149 = vadd.f32 %v96, %v148
    %v150 = vpop.f32.mrb[0].mxu0
    %v151 = vpop.f32.mrb[0].mxu0
    %v152 = vpop.f32.mrb[0].mxu0
    %153 = vdwg.mxu0
    %v154 = vmax.f32 %v149, 0.0
    %v155 = vpack.c.bf16 %v154, %v154
    %v156 = vld [vmem:[#allocation8] sm:$0xff]
    %v157 = vld [vmem:[#allocation8 + $0x8] sm:$0xff]
    %v158 = vld [vmem:[#allocation8 + $0x10] sm:$0xff]
    %v159 = vld [vmem:[#allocation8 + $0x18] sm:$0xff]
    %v160 = vld [vmem:[#allocation8 + $0x20] sm:$0xff]
    %v161 = vld [vmem:[#allocation8 + $0x28] sm:$0xff]
    %v162 = vld [vmem:[#allocation8 + $0x30] sm:$0xff]
    %v163 = vld [vmem:[#allocation8 + $0x38] sm:$0xff]
    %v164 = vld [vmem:[#allocation8 + $0x40] sm:$0xff]
    %v165 = vld [vmem:[#allocation8 + $0x48] sm:$0xff]
    %v166 = vld [vmem:[#allocation8 + $0x50] sm:$0xff]
    %v167 = vld [vmem:[#allocation8 + $0x58] sm:$0xff]
    %v168 = vld [vmem:[#allocation8 + $0x60] sm:$0xff]
    %v169 = vld [vmem:[#allocation8 + $0x68] sm:$0xff]
    %v170 = vld [vmem:[#allocation8 + $0x70] sm:$0xff]
    %v171 = vld [vmem:[#allocation8 + $0x78] sm:$0xff]
    %v172 = vld [vmem:[%s5] sm:$0x3]
    %v174 = vlaneseq
    %v175 = vshrl.u32 %v174, 7
    %v176 = vsub.s32 0, %v175
    %v177 = vrot.slane %v172, %v176
    %v178 = vlaneseq
    %v179 = vshrl.u32 %v178, 7
    %v180 = vsub.s32 1, %v179
    %v181 = vrot.slane %v172, %v180
    %v200 = vunpack.c.l.b16 %v156
    %v201 = vunpack.c.h.b16 %v156
    %v202 = vunpack.c.l.b16 %v157
    %v203 = vunpack.c.h.b16 %v157
    %v204 = vunpack.c.l.b16 %v158
    %v205 = vunpack.c.h.b16 %v158
    %v206 = vunpack.c.l.b16 %v159
    %v207 = vunpack.c.h.b16 %v159
    %v208 = vunpack.c.l.b16 %v160
    %v209 = vunpack.c.h.b16 %v160
    %v210 = vunpack.c.l.b16 %v161
    %v211 = vunpack.c.h.b16 %v161
    %v212 = vunpack.c.l.b16 %v162
    %v213 = vunpack.c.h.b16 %v162
    %v214 = vunpack.c.l.b16 %v163
    %v215 = vunpack.c.h.b16 %v163
    %v216 = vunpack.c.l.b16 %v164
    %v217 = vunpack.c.h.b16 %v164
    %v218 = vunpack.c.l.b16 %v165
    %v219 = vunpack.c.h.b16 %v165
    %v220 = vunpack.c.l.b16 %v166
    %v221 = vunpack.c.h.b16 %v166
    %v222 = vunpack.c.l.b16 %v167
    %v223 = vunpack.c.h.b16 %v167
    %v224 = vunpack.c.l.b16 %v168
    %v225 = vunpack.c.h.b16 %v168
    %v226 = vunpack.c.l.b16 %v169
    %v227 = vunpack.c.h.b16 %v169
    %v228 = vunpack.c.l.b16 %v170
    %v229 = vunpack.c.h.b16 %v170
    %v230 = vunpack.c.l.b16 %v171
    %v231 = vunpack.c.h.b16 %v171
    %v232 = vpack.c.b16 %v202, %v200
    %v233 = vpack.c.b16 %v203, %v201
    %v234 = vpack.c.b16 %v206, %v204
    %v235 = vpack.c.b16 %v207, %v205
    %v236 = vpack.c.b16 %v210, %v208
    %v237 = vpack.c.b16 %v211, %v209
    %v238 = vpack.c.b16 %v214, %v212
    %v239 = vpack.c.b16 %v215, %v213
    %v240 = vpack.c.b16 %v218, %v216
    %v241 = vpack.c.b16 %v219, %v217
    %v242 = vpack.c.b16 %v222, %v220
    %v243 = vpack.c.b16 %v223, %v221
    %v244 = vpack.c.b16 %v226, %v224
    %v245 = vpack.c.b16 %v227, %v225
    %v246 = vpack.c.b16 %v230, %v228
    %v247 = vpack.c.b16 %v231, %v229
    %264 = vmatprep.subr.bf16.mxu0 %v233
    %265 = vmatpush1.bf16.msra.mxu0 %v232
    %266 = vmatprep.subr.bf16.mxu0 %v235
    %267 = vmatpush1.bf16.msra.mxu0 %v234
    %268 = vmatprep.subr.bf16.mxu0 %v237
    %269 = vmatpush1.bf16.msra.mxu0 %v236
    %270 = vmatprep.subr.bf16.mxu0 %v239
    %271 = vmatpush1.bf16.msra.mxu0 %v238
    %272 = vmatprep.subr.bf16.mxu0 %v241
    %273 = vmatpush1.bf16.msra.mxu0 %v240
    %274 = vmatprep.subr.bf16.mxu0 %v243
    %275 = vmatpush1.bf16.msra.mxu0 %v242
    %276 = vmatprep.subr.bf16.mxu0 %v245
    %277 = vmatpush1.bf16.msra.mxu0 %v244
    %278 = vmatprep.subr.bf16.mxu0 %v247
    %279 = vmatpush1.bf16.msra.mxu0 %v246
    %280 = vmatprep.subr.bf16.mxu0 0
    %281 = vmatpush1.bf16.msra.mxu0 0
    %282 = vmatprep.subr.bf16.mxu0 0
    %283 = vmatpush1.bf16.msra.mxu0 0
    %284 = vmatprep.subr.bf16.mxu0 0
    %285 = vmatpush1.bf16.msra.mxu0 0
    %286 = vmatprep.subr.bf16.mxu0 0
    %287 = vmatpush1.bf16.msra.mxu0 0
    %288 = vmatprep.subr.bf16.mxu0 0
    %289 = vmatpush1.bf16.msra.mxu0 0
    %290 = vmatprep.subr.bf16.mxu0 0
    %291 = vmatpush1.bf16.msra.mxu0 0
    %292 = vmatprep.subr.bf16.mxu0 0
    %293 = vmatpush1.bf16.msra.mxu0 0
    %294 = vmatprep.subr.bf16.mxu0 0
    %295 = vmatpush1.bf16.msra.mxu0 0
    %296 = vmatprep.mubr.bf16.mxu0 0
    %297 = vmatmul.mubr.bf16.gmra.mrb[0].mxu0 %v155
    %v298 = vpop.f32.mrb[0].mxu0
    %v299 = vadd.f32 %v177, %v298
    %v300 = vpop.f32.mrb[0].mxu0
    %v301 = vadd.f32 %v181, %v300
    %v302 = vpop.f32.mrb[0].mxu0
    %v303 = vpop.f32.mrb[0].mxu0
    %304 = vdwg.mxu0
    %v305 = vmax.f32 %v299, 0.0
    %v306 = vmax.f32 %v301, 0.0
    %v307 = vpack.c.bf16 %v305, %v305
    %v308 = vpack.c.bf16 %v306, %v306
    %v309 = vld [vmem:[#allocation9] sm:$0xf]
    %v310 = vld [vmem:[#allocation9 + $0x4] sm:$0xf]
    %v311 = vld [vmem:[#allocation9 + $0x8] sm:$0xf]
    %v312 = vld [vmem:[#allocation9 + $0xc] sm:$0xf]
    %v313 = vld [vmem:[#allocation9 + $0x10] sm:$0xf]
    %v314 = vld [vmem:[#allocation9 + $0x14] sm:$0xf]
    %v315 = vld [vmem:[#allocation9 + $0x18] sm:$0xf]
    %v316 = vld [vmem:[#allocation9 + $0x1c] sm:$0xf]
    %v317 = vld [vmem:[#allocation9 + $0x20] sm:$0xf]
    %v318 = vld [vmem:[#allocation9 + $0x24] sm:$0xf]
    %v319 = vld [vmem:[#allocation9 + $0x28] sm:$0xf]
    %v320 = vld [vmem:[#allocation9 + $0x2c] sm:$0xf]
    %v321 = vld [vmem:[#allocation9 + $0x30] sm:$0xf]
    %v322 = vld [vmem:[#allocation9 + $0x34] sm:$0xf]
    %v323 = vld [vmem:[#allocation9 + $0x38] sm:$0xf]
    %v324 = vld [vmem:[#allocation9 + $0x3c] sm:$0xf]
    %v325 = vld [vmem:[#allocation9 + $0x40] sm:$0xf]
    %v326 = vld [vmem:[#allocation9 + $0x44] sm:$0xf]
    %v327 = vld [vmem:[#allocation9 + $0x48] sm:$0xf]
    %v328 = vld [vmem:[#allocation9 + $0x4c] sm:$0xf]
    %v329 = vld [vmem:[#allocation9 + $0x50] sm:$0xf]
    %v330 = vld [vmem:[#allocation9 + $0x54] sm:$0xf]
    %v331 = vld [vmem:[#allocation9 + $0x58] sm:$0xf]
    %v332 = vld [vmem:[#allocation9 + $0x5c] sm:$0xf]
    %v333 = vld [vmem:[#allocation9 + $0x60] sm:$0xf]
    %v334 = vld [vmem:[#allocation9 + $0x64] sm:$0xf]
    %v335 = vld [vmem:[#allocation9 + $0x68] sm:$0xf]
    %v336 = vld [vmem:[#allocation9 + $0x6c] sm:$0xf]
    %v337 = vld [vmem:[#allocation9 + $0x70] sm:$0xf]
    %v338 = vld [vmem:[#allocation9 + $0x74] sm:$0xf]
    %v339 = vld [vmem:[#allocation9 + $0x78] sm:$0xf]
    %v340 = vld [vmem:[#allocation9 + $0x7c] sm:$0xf]
    %v341 = vld [vmem:[%s7] sm:$0x1]
    %v343 = vlaneseq
    %v344 = vshrl.u32 %v343, 7
    %v345 = vsub.s32 0, %v344
    %v346 = vrot.slane %v341, %v345
    %v380 = vunpack.c.l.b16 %v309
    %v381 = vunpack.c.l.b16 %v310
    %v382 = vunpack.c.l.b16 %v311
    %v383 = vunpack.c.l.b16 %v312
    %v384 = vunpack.c.l.b16 %v313
    %v385 = vunpack.c.l.b16 %v314
    %v386 = vunpack.c.l.b16 %v315
    %v387 = vunpack.c.l.b16 %v316
    %v388 = vunpack.c.l.b16 %v317
    %v389 = vunpack.c.l.b16 %v318
    %v390 = vunpack.c.l.b16 %v319
    %v391 = vunpack.c.l.b16 %v320
    %v392 = vunpack.c.l.b16 %v321
    %v393 = vunpack.c.l.b16 %v322
    %v394 = vunpack.c.l.b16 %v323
    %v395 = vunpack.c.l.b16 %v324
    %v396 = vunpack.c.l.b16 %v325
    %v397 = vunpack.c.l.b16 %v326
    %v398 = vunpack.c.l.b16 %v327
    %v399 = vunpack.c.l.b16 %v328
    %v400 = vunpack.c.l.b16 %v329
    %v401 = vunpack.c.l.b16 %v330
    %v402 = vunpack.c.l.b16 %v331
    %v403 = vunpack.c.l.b16 %v332
    %v404 = vunpack.c.l.b16 %v333
    %v405 = vunpack.c.l.b16 %v334
    %v406 = vunpack.c.l.b16 %v335
    %v407 = vunpack.c.l.b16 %v336
    %v408 = vunpack.c.l.b16 %v337
    %v409 = vunpack.c.l.b16 %v338
    %v410 = vunpack.c.l.b16 %v339
    %v411 = vunpack.c.l.b16 %v340
    %v412 = vpack.c.b16 %v381, %v380
    %v413 = vpack.c.b16 %v383, %v382
    %v414 = vpack.c.b16 %v385, %v384
    %v415 = vpack.c.b16 %v387, %v386
    %v416 = vpack.c.b16 %v389, %v388
    %v417 = vpack.c.b16 %v391, %v390
    %v418 = vpack.c.b16 %v393, %v392
    %v419 = vpack.c.b16 %v395, %v394
    %v420 = vpack.c.b16 %v397, %v396
    %v421 = vpack.c.b16 %v399, %v398
    %v422 = vpack.c.b16 %v401, %v400
    %v423 = vpack.c.b16 %v403, %v402
    %v424 = vpack.c.b16 %v405, %v404
    %v425 = vpack.c.b16 %v407, %v406
    %v426 = vpack.c.b16 %v409, %v408
    %v427 = vpack.c.b16 %v411, %v410
    %444 = vmatprep.subr.bf16.mxu0 0
    %445 = vmatpush1.bf16.msra.mxu0 %v412
    %446 = vmatprep.subr.bf16.mxu0 0
    %447 = vmatpush1.bf16.msra.mxu0 %v413
    %448 = vmatprep.subr.bf16.mxu0 0
    %449 = vmatpush1.bf16.msra.mxu0 %v414
    %450 = vmatprep.subr.bf16.mxu0 0
    %451 = vmatpush1.bf16.msra.mxu0 %v415
    %452 = vmatprep.subr.bf16.mxu0 0
    %453 = vmatpush1.bf16.msra.mxu0 %v416
    %454 = vmatprep.subr.bf16.mxu0 0
    %455 = vmatpush1.bf16.msra.mxu0 %v417
    %456 = vmatprep.subr.bf16.mxu0 0
    %457 = vmatpush1.bf16.msra.mxu0 %v418
    %458 = vmatprep.subr.bf16.mxu0 0
    %459 = vmatpush1.bf16.msra.mxu0 %v419
    %460 = vmatprep.subr.bf16.mxu0 0
    %461 = vmatpush1.bf16.msra.mxu0 %v420
    %462 = vmatprep.subr.bf16.mxu0 0
    %463 = vmatpush1.bf16.msra.mxu0 %v421
    %464 = vmatprep.subr.bf16.mxu0 0
    %465 = vmatpush1.bf16.msra.mxu0 %v422
    %466 = vmatprep.subr.bf16.mxu0 0
    %467 = vmatpush1.bf16.msra.mxu0 %v423
    %468 = vmatprep.subr.bf16.mxu0 0
    %469 = vmatpush1.bf16.msra.mxu0 %v424
    %470 = vmatprep.subr.bf16.mxu0 0
    %471 = vmatpush1.bf16.msra.mxu0 %v425
    %472 = vmatprep.subr.bf16.mxu0 0
    %473 = vmatpush1.bf16.msra.mxu0 %v426
    %474 = vmatprep.subr.bf16.mxu0 0
    %475 = vmatpush1.bf16.msra.mxu0 %v427
    %476 = vmatprep.mubr.bf16.mxu0 %v308
    %477 = vmatmul.mubr.bf16.gmra.mrb[0].mxu0 %v307
    %v478 = vpop.f32.mrb[0].mxu0
    %v479 = vadd.f32 %v346, %v478
    %v480 = vpop.f32.mrb[0].mxu0
    %v481 = vpop.f32.mrb[0].mxu0
    %v482 = vpop.f32.mrb[0].mxu0
    %483 = vdwg.mxu0
    %v484 = vtanh.pop %v479
    %v485 = vstv %s85
    %v486 = vmul.f32 %v485, %v484
    %487 = vst [vmem:[#allocation11] sm:$0xff] %v486
    // Predicated region
    $region50: #{tpu_custom_call.1} parent=1 // pred_check
      _
    $region51: #{tpu_custom_call.1} parent=1 // pred_check_branch
      %489 = sbr.rel (0) target = $region53
    $region52: #{tpu_custom_call.1} parent=1 // pred_region
      %s491 = ssub.s32 128, 128
      %492 = vsyncadd [#allocation5], %s491
      %s494 = sshll.u32 [#allocation11], 4
      %s495 = int_to_ptr.vmem [resolvable:$true] %s494
      %497 = dma.vmem_to_hbm [thread:$0]  %s495, 128, %s8, [#allocation5]
    $region53: #{tpu_custom_call.1} parent=1 // pred_fallthru
      _
    // Predicated region
    $region54: #{tpu_custom_call.1} parent=1 // pred_check
      _
    $region55: #{tpu_custom_call.1} parent=1 // pred_check_branch
      %499 = sbr.rel (0) target = $region57
    $region56: #{tpu_custom_call.1} parent=1 // pred_region
      %500 = dma.done [#allocation5], 128
    $region57: #{tpu_custom_call.1} parent=1 // pred_fallthru
      _
    %501 = vsyncpa [#allocation4], 1
    %502 = vsyncpa [#allocation7], 1
    %503 = vsyncpa [#allocation10], 1
    %504 = vsyncpa [#allocation5], 1

</llo_original>
